<compile_context>
chip_gen: v7x
topology: tpu7x:2x2x1
jax: 0.10.0
libtpu: 0.0.40
codegen_flags: <defaults>
</compile_context>

<pallas_src>
import functools

import jax
import jax.numpy as jnp
from jax.experimental import pallas as pl
from jax.experimental.pallas import tpu as pltpu

_LANES = 128


def _fused_feature_matching_kernel(real_ref, fake_ref, out_ref, *,
                                   feats, normalize, inv_matched):
    """real_ref/fake_ref: (R, 128) packed slabs. out_ref: (1,) SMEM scalar.

    feats: tuple of (row_offset, B, M, D, weight) static descriptors.
    """
    # Keep the explicit f32 upcast: v5e VPU/EUP have no bf16 path, and all the
    # reductions below must accumulate in f32 regardless of input dtype.
    real = real_ref[...].astype(jnp.float32)   # (R, 128)
    fake = fake_ref[...].astype(jnp.float32)   # (R, 128)

    if normalize:
        # F.normalize(x, p=2, dim=-1) = x / max(||x||_2, eps)
        #                             = x * rsqrt(max(sum(x^2), eps^2))
        # rsqrt runs on the (otherwise idle) EUP slot instead of a VALU divide.
        # Padded lanes are zero so the lane sum equals the true sum over D.
        eps_sq = jnp.float32(1e-24)
        real = real * jax.lax.rsqrt(
            jnp.maximum(jnp.sum(real * real, axis=-1, keepdims=True), eps_sq))
        fake = fake * jax.lax.rsqrt(
            jnp.maximum(jnp.sum(fake * fake, axis=-1, keepdims=True), eps_sq))

    # mse_loss(mean_B(fake), mean_B(real).detach())  [forward value]
    #   = sum_{M,D} (sum_B (fake - real))^2 / (B^2 * M * D)
    # Compute diff before the batch sum (algebraically identical) so only one
    # (rows,128) temporary is live, then reduce per-feature only along rows
    # into a persistent per-lane accumulator.
    diff = fake - real                          # (R, 128); padding -> exactly 0

    acc = jnp.zeros((1, _LANES), dtype=jnp.float32)
    for (off, B, M, D, w) in feats:
        # Batch sum over B via static row windows (row index = b*M + m).
        dsum = diff[off:off + M, :]
        for b in range(1, B):
            dsum = dsum + diff[off + b * M:off + (b + 1) * M, :]
        # Weight, batch-mean and MSE-mean folded into one compile-time scalar.
        scale = jnp.float32(w / (B * B * M * D))
        acc = acc + jnp.sum(dsum * dsum, axis=0, keepdims=True) * scale

    # Single cross-lane reduce + single scalar SMEM write for the whole loss.
    out_ref[0] = jnp.sum(acc) * jnp.float32(inv_matched)


class FeatureMatchingLoss:
    """JAX/Pallas port of the PyTorch FeatureMatchingLoss forward pass."""

    def __init__(self, feature_weights=None, normalize_features: bool = True):
        if feature_weights is None:
            feature_weights = {'local': 0.4, 'phrase': 0.4, 'global': 0.2, 'input': 0.1}
        self.feature_weights = feature_weights
        self.normalize_features = normalize_features

    def __call__(self, real_features, fake_features):
        names = [n for n in real_features
                 if n in fake_features and n in self.feature_weights]
        if not names:
            return jnp.float32(0.0)

        # Pack every matched feature into two lane-dense (rows, 128) slabs.
        # NOTE: feats/weights are baked as static constants -> changing the
        # matched-feature set, shapes or weights retraces/recompiles.
        real_blocks, fake_blocks, feats = [], [], []
        row_off = 0
        for name in names:
            r = jnp.asarray(real_features[name])
            f = jnp.asarray(fake_features[name])
            if r.ndim == 2:                       # (B, D) -> (B, 1, D)
                r = r[:, None, :]
                f = f[:, None, :]
            assert r.ndim == 3 and r.shape == f.shape
            B, M, D = r.shape
            assert D <= _LANES, "TODO(synk): split lane groups for D > 128"

            rows = B * M
            pad_rows = (-rows) % 8                # sublane-align each window

            def pack(x):
                x2 = x.reshape(rows, D).astype(jnp.float32)
                return jnp.pad(x2, ((0, pad_rows), (0, _LANES - D)))

            real_blocks.append(pack(r))
            fake_blocks.append(pack(f))
            feats.append((row_off, B, M, D,
                          float(self.feature_weights.get(name, 1.0))))
            row_off += rows + pad_rows

        real_slab = jnp.concatenate(real_blocks, axis=0)   # (R, 128) f32
        fake_slab = jnp.concatenate(fake_blocks, axis=0)   # (R, 128) f32

        kernel = functools.partial(
            _fused_feature_matching_kernel,
            feats=tuple(feats),
            normalize=self.normalize_features,
            inv_matched=1.0 / len(names),
        )

        out = pl.pallas_call(
            kernel,
            out_shape=jax.ShapeDtypeStruct((1,), jnp.float32),
            in_specs=[pl.BlockSpec(memory_space=pltpu.MemorySpace.VMEM),
                      pl.BlockSpec(memory_space=pltpu.MemorySpace.VMEM)],
            out_specs=pl.BlockSpec(memory_space=pltpu.MemorySpace.SMEM),
        )(real_slab, fake_slab)
        return out[0]


def _reference_loss(real_features, fake_features, feature_weights, normalize):
    # Pure-JAX reference mirroring the PyTorch forward, for validation.
    total = jnp.float32(0.0)
    matched = 0
    for name in real_features:
        if name in fake_features and name in feature_weights:
            r = real_features[name].astype(jnp.float32)
            f = fake_features[name].astype(jnp.float32)
            if normalize:
                r = r / jnp.maximum(jnp.linalg.norm(r, axis=-1, keepdims=True), 1e-12)
                f = f / jnp.maximum(jnp.linalg.norm(f, axis=-1, keepdims=True), 1e-12)
            loss = jnp.mean((f.mean(axis=0) - r.mean(axis=0)) ** 2)
            total = total + feature_weights.get(name, 1.0) * loss
            matched += 1
    if matched > 0:
        total = total / matched
    return total


if __name__ == "__main__":
    key = jax.random.PRNGKey(0)
    ks = jax.random.split(key, 8)

    B, S, D = 2, 8, 32
    # Discriminator intermediate features at small shapes.
    real_features = {
        'local':  jax.random.normal(ks[0], (B, S, D), dtype=jnp.float32),
        'phrase': jax.random.normal(ks[1], (B, 4, D), dtype=jnp.float32),
        'global': jax.random.normal(ks[2], (B, D), dtype=jnp.float32),
        'input':  jax.random.normal(ks[3], (B, S, 16), dtype=jnp.float32),
    }
    fake_features = {
        'local':  jax.random.normal(ks[4], (B, S, D), dtype=jnp.float32),
        'phrase': jax.random.normal(ks[5], (B, 4, D), dtype=jnp.float32),
        'global': jax.random.normal(ks[6], (B, D), dtype=jnp.float32),
        'input':  jax.random.normal(ks[7], (B, S, 16), dtype=jnp.float32),
    }

    loss_fn = FeatureMatchingLoss()
    loss = jax.block_until_ready(loss_fn(real_features, fake_features))

    ref = jax.block_until_ready(_reference_loss(
        real_features, fake_features,
        loss_fn.feature_weights, loss_fn.normalize_features))

    assert jnp.allclose(loss, ref, atol=1e-5, rtol=1e-5), (loss, ref)
    print("KERNEL_OK")
</pallas_src>

<mosaic_0001>
module attributes {stable_mosaic.version = 11 : i64} {
  func.func @_fused_feature_matching_kernel(%arg0: memref<48x128xf32, #tpu.memory_space<vmem>>, %arg1: memref<48x128xf32, #tpu.memory_space<vmem>>, %arg2: memref<1xf32, #tpu.memory_space<smem>>) attributes {dimension_semantics = [], scalar_prefetch = 0 : i64, scratch_operands = 0 : i64, tpu.core_type = #tpu.core_type<tc>} {
    %c0 = arith.constant 0 : index
    %c0_0 = arith.constant 0 : index
    %0 = vector.load %arg0[%c0, %c0_0] : memref<48x128xf32, #tpu.memory_space<vmem>>, vector<48x128xf32>
    %c0_1 = arith.constant 0 : index
    %c0_2 = arith.constant 0 : index
    %1 = vector.load %arg1[%c0_1, %c0_2] : memref<48x128xf32, #tpu.memory_space<vmem>>, vector<48x128xf32>
    %2 = arith.mulf %0, %0 : vector<48x128xf32>
    %cst = arith.constant dense<0.000000e+00> : vector<48xf32>
    %3 = vector.multi_reduction <add>, %2, %cst [1] : vector<48x128xf32> to vector<48xf32>
    %4 = vector.shape_cast %3 : vector<48xf32> to vector<48x1xf32>
    %cst_3 = arith.constant 1.000000e-24 : f32
    %5 = vector.broadcast %cst_3 : f32 to vector<48x1xf32>
    %6 = arith.maximumf %4, %5 : vector<48x1xf32>
    %7 = math.rsqrt %6 : vector<48x1xf32>
    %8 = vector.broadcast %7 : vector<48x1xf32> to vector<48x128xf32>
    %9 = arith.mulf %0, %8 : vector<48x128xf32>
    %10 = arith.mulf %1, %1 : vector<48x128xf32>
    %cst_4 = arith.constant dense<0.000000e+00> : vector<48xf32>
    %11 = vector.multi_reduction <add>, %10, %cst_4 [1] : vector<48x128xf32> to vector<48xf32>
    %12 = vector.shape_cast %11 : vector<48xf32> to vector<48x1xf32>
    %cst_5 = arith.constant 1.000000e-24 : f32
    %13 = vector.broadcast %cst_5 : f32 to vector<48x1xf32>
    %14 = arith.maximumf %12, %13 : vector<48x1xf32>
    %15 = math.rsqrt %14 : vector<48x1xf32>
    %16 = vector.broadcast %15 : vector<48x1xf32> to vector<48x128xf32>
    %17 = arith.mulf %1, %16 : vector<48x128xf32>
    %18 = arith.subf %17, %9 : vector<48x128xf32>
    %cst_6 = arith.constant 0.000000e+00 : f32
    %19 = vector.broadcast %cst_6 : f32 to vector<1x128xf32>
    %20 = vector.extract_strided_slice %18 {offsets = [0, 0], sizes = [8, 128], strides = [1, 1]} : vector<48x128xf32> to vector<8x128xf32>
    %21 = vector.extract_strided_slice %18 {offsets = [8, 0], sizes = [8, 128], strides = [1, 1]} : vector<48x128xf32> to vector<8x128xf32>
    %22 = arith.addf %20, %21 : vector<8x128xf32>
    %23 = arith.mulf %22, %22 : vector<8x128xf32>
    %cst_7 = arith.constant dense<0.000000e+00> : vector<128xf32>
    %24 = vector.multi_reduction <add>, %23, %cst_7 [0] : vector<8x128xf32> to vector<128xf32>
    %25 = vector.shape_cast %24 : vector<128xf32> to vector<1x128xf32>
    %cst_8 = arith.constant 3.906250e-04 : f32
    %26 = vector.broadcast %cst_8 : f32 to vector<1x128xf32>
    %27 = arith.mulf %25, %26 : vector<1x128xf32>
    %28 = arith.addf %19, %27 : vector<1x128xf32>
    %29 = vector.extract_strided_slice %18 {offsets = [16, 0], sizes = [4, 128], strides = [1, 1]} : vector<48x128xf32> to vector<4x128xf32>
    %30 = vector.extract_strided_slice %18 {offsets = [20, 0], sizes = [4, 128], strides = [1, 1]} : vector<48x128xf32> to vector<4x128xf32>
    %31 = arith.addf %29, %30 : vector<4x128xf32>
    %32 = arith.mulf %31, %31 : vector<4x128xf32>
    %cst_9 = arith.constant dense<0.000000e+00> : vector<128xf32>
    %33 = vector.multi_reduction <add>, %32, %cst_9 [0] : vector<4x128xf32> to vector<128xf32>
    %34 = vector.shape_cast %33 : vector<128xf32> to vector<1x128xf32>
    %cst_10 = arith.constant 7.812500e-04 : f32
    %35 = vector.broadcast %cst_10 : f32 to vector<1x128xf32>
    %36 = arith.mulf %34, %35 : vector<1x128xf32>
    %37 = arith.addf %28, %36 : vector<1x128xf32>
    %38 = vector.extract_strided_slice %18 {offsets = [24, 0], sizes = [1, 128], strides = [1, 1]} : vector<48x128xf32> to vector<1x128xf32>
    %39 = vector.extract_strided_slice %18 {offsets = [25, 0], sizes = [1, 128], strides = [1, 1]} : vector<48x128xf32> to vector<1x128xf32>
    %40 = arith.addf %38, %39 : vector<1x128xf32>
    %41 = arith.mulf %40, %40 : vector<1x128xf32>
    %cst_11 = arith.constant dense<0.000000e+00> : vector<128xf32>
    %42 = vector.multi_reduction <add>, %41, %cst_11 [0] : vector<1x128xf32> to vector<128xf32>
    %43 = vector.shape_cast %42 : vector<128xf32> to vector<1x128xf32>
    %cst_12 = arith.constant 1.562500e-03 : f32
    %44 = vector.broadcast %cst_12 : f32 to vector<1x128xf32>
    %45 = arith.mulf %43, %44 : vector<1x128xf32>
    %46 = arith.addf %37, %45 : vector<1x128xf32>
    %47 = vector.extract_strided_slice %18 {offsets = [32, 0], sizes = [8, 128], strides = [1, 1]} : vector<48x128xf32> to vector<8x128xf32>
    %48 = vector.extract_strided_slice %18 {offsets = [40, 0], sizes = [8, 128], strides = [1, 1]} : vector<48x128xf32> to vector<8x128xf32>
    %49 = arith.addf %47, %48 : vector<8x128xf32>
    %50 = arith.mulf %49, %49 : vector<8x128xf32>
    %cst_13 = arith.constant dense<0.000000e+00> : vector<128xf32>
    %51 = vector.multi_reduction <add>, %50, %cst_13 [0] : vector<8x128xf32> to vector<128xf32>
    %52 = vector.shape_cast %51 : vector<128xf32> to vector<1x128xf32>
    %cst_14 = arith.constant 1.95312503E-4 : f32
    %53 = vector.broadcast %cst_14 : f32 to vector<1x128xf32>
    %54 = arith.mulf %52, %53 : vector<1x128xf32>
    %55 = arith.addf %46, %54 : vector<1x128xf32>
    %56 = vector.shape_cast %55 : vector<1x128xf32> to vector<1x1x128xf32>
    %cst_15 = arith.constant dense<0.000000e+00> : vector<1xf32>
    %57 = vector.multi_reduction <add>, %56, %cst_15 [1, 2] : vector<1x1x128xf32> to vector<1xf32>
    %58 = vector.shape_cast %57 : vector<1xf32> to vector<1x1x1xf32>
    %59 = vector.extract %58[0, 0, 0] : f32 from vector<1x1x1xf32>
    %cst_16 = arith.constant 2.500000e-01 : f32
    %60 = arith.mulf %59, %cst_16 : f32
    %c0_17 = arith.constant 0 : index
    %61 = memref.load %arg2[%c0_17] : memref<1xf32, #tpu.memory_space<smem>>
    memref.store %60, %arg2[%c0_17] : memref<1xf32, #tpu.memory_space<smem>>
    return
  }
}

</mosaic_0001>

<llo_original>
// kernel: tpu_custom_call.1
$region0: #{tpu_custom_call.1}
  #allocation0 [shape = 'u32[]', space=smem, size = 0x4, offset = 0x4, fixed_abs, tag = 'smem constant byte address 0x4 - core index']
  #allocation1 [shape = 'u32[144,128]{1,0:T(1,128)}', space=vmem, size = 0x12000, scoped, tag = 'internal scratch']
  %s0 = inlined_call_operand.hbm [shape: f32[48,128], index: 0, kind: input, shape index: {}]
  %s1 = inlined_call_operand.hbm [shape: f32[48,128], index: 1, kind: input, shape index: {}]
  %s2 = inlined_call_operand.hbm [shape: f32[1], index: 2, kind: output, shape index: {}]
  %s3 = sld [smem:[#allocation0]]
  $region26: #{tpu_custom_call.1} parent=0
    _
  %s5 = ssub.s32 1, %s3
  %s6 = scalar_select 0, %s5, %s3
  $region1: #{tpu_custom_call.1} parent=0
    #allocation2 [shape = 'u8[24576]{0}', space=vmem, size = 0x6000, scoped, tag = 'input window, operand 0, single buffered']
    #allocation3 [shape = 's32[1]{0}', space=sflag, size = 0x4, scoped, tag = 'scoped memory for tpu_custom_call.1']
    #allocation4 [shape = 's32[1]{0}', space=sflag, size = 0x4, scoped, tag = 'scoped memory for tpu_custom_call.1']
    #allocation5 [shape = 'u8[24576]{0}', space=vmem, size = 0x6000, scoped, tag = 'input window, operand 1, single buffered']
    #allocation6 [shape = 's32[1]{0}', space=sflag, size = 0x4, scoped, tag = 'scoped memory for tpu_custom_call.1']
    #allocation7 [shape = 'u8[512]{0}', space=smem, size = 0x200, scoped, tag = 'output window, operand 0, single buffered']
    %7 = vsyncpa [#allocation3], 0
    %8 = vsyncpa [#allocation6], 0
    %9 = vsyncpa [#allocation4], 0
    // Predicated region
    $region2: #{tpu_custom_call.1} parent=1 // pred_check
      _
    $region3: #{tpu_custom_call.1} parent=1 // pred_check_branch
      %11 = sbr.rel (0) target = $region5
    $region4: #{tpu_custom_call.1} parent=1 // pred_region
      %s13 = ssub.s32 768, 768
      %14 = vsyncadd [#allocation3], %s13
      %s15 = sshll.u32 [#allocation2], 4
      %s16 = int_to_ptr.vmem [resolvable:$true] %s15
      %21 = dma.hbm_to_vmem [thread:$0]  %s0, 768, %s16, [#allocation3], 128, 128, 8
    $region5: #{tpu_custom_call.1} parent=1 // pred_fallthru
      _
    // Predicated region
    $region6: #{tpu_custom_call.1} parent=1 // pred_check
      _
    $region7: #{tpu_custom_call.1} parent=1 // pred_check_branch
      %23 = sbr.rel (0) target = $region9
    $region8: #{tpu_custom_call.1} parent=1 // pred_region
      %s25 = ssub.s32 768, 768
      %26 = vsyncadd [#allocation6], %s25
      %s27 = sshll.u32 [#allocation5], 4
      %s28 = int_to_ptr.vmem [resolvable:$true] %s27
      %33 = dma.hbm_to_vmem [thread:$0]  %s1, 768, %s28, [#allocation6], 128, 128, 8
    $region9: #{tpu_custom_call.1} parent=1 // pred_fallthru
      _
    // Predicated region
    $region10: #{tpu_custom_call.1} parent=1 // pred_check
      _
    $region11: #{tpu_custom_call.1} parent=1 // pred_check_branch
      %35 = sbr.rel (0) target = $region13
    $region12: #{tpu_custom_call.1} parent=1 // pred_region
      %36 = dma.done [#allocation3], 768
    $region13: #{tpu_custom_call.1} parent=1 // pred_fallthru
      _
    // Predicated region
    $region14: #{tpu_custom_call.1} parent=1 // pred_check
      _
    $region15: #{tpu_custom_call.1} parent=1 // pred_check_branch
      %38 = sbr.rel (0) target = $region17
    $region16: #{tpu_custom_call.1} parent=1 // pred_region
      %39 = dma.done [#allocation6], 768
    $region17: #{tpu_custom_call.1} parent=1 // pred_fallthru
      _
    %v40 = vld [vmem:[#allocation2] sm:$0xff]
    %v41 = vld [vmem:[#allocation2 + $0x8] sm:$0xff]
    %v42 = vld [vmem:[#allocation2 + $0x10] sm:$0xff]
    %v43 = vld [vmem:[#allocation2 + $0x18] sm:$0xff]
    %v44 = vld [vmem:[#allocation2 + $0x20] sm:$0xff]
    %v45 = vld [vmem:[#allocation2 + $0x28] sm:$0xff]
    %v46 = vld [vmem:[#allocation5] sm:$0xff]
    %v47 = vld [vmem:[#allocation5 + $0x8] sm:$0xff]
    %v48 = vld [vmem:[#allocation5 + $0x10] sm:$0xff]
    %v49 = vld [vmem:[#allocation5 + $0x18] sm:$0xff]
    %v50 = vld [vmem:[#allocation5 + $0x20] sm:$0xff]
    %v51 = vld [vmem:[#allocation5 + $0x28] sm:$0xff]
    %v52 = vmul.f32 %v40, %v40
    %v53 = vmul.f32 %v41, %v41
    %v54 = vmul.f32 %v42, %v42
    %v55 = vmul.f32 %v43, %v43
    %v56 = vmul.f32 %v44, %v44
    %v57 = vmul.f32 %v45, %v45
    %58 = vadd.xlane.f32.xlu0 %v52
    %v59 = vpop.xlane.xlu0 %58
    %60 = vadd.xlane.f32.xlu0 %v53
    %v61 = vpop.xlane.xlu0 %60
    %62 = vadd.xlane.f32.xlu0 %v54
    %v63 = vpop.xlane.xlu0 %62
    %64 = vadd.xlane.f32.xlu0 %v55
    %v65 = vpop.xlane.xlu0 %64
    %66 = vadd.xlane.f32.xlu0 %v56
    %v67 = vpop.xlane.xlu0 %66
    %68 = vadd.xlane.f32.xlu0 %v57
    %v69 = vpop.xlane.xlu0 %68
    %v70 = vmax.f32 %v59, 1e-24
    %v71 = vmax.f32 %v61, 1e-24
    %v72 = vmax.f32 %v63, 1e-24
    %v73 = vmax.f32 %v65, 1e-24
    %v74 = vmax.f32 %v67, 1e-24
    %v75 = vmax.f32 %v69, 1e-24
    %v76 = vrsqrt.pop %v70
    %v77 = vrsqrt.pop %v71
    %v78 = vrsqrt.pop %v72
    %v79 = vrsqrt.pop %v73
    %v80 = vrsqrt.pop %v74
    %v81 = vrsqrt.pop %v75
    %v82 = vmul.f32 %v40, %v76
    %v83 = vmul.f32 %v41, %v77
    %v84 = vmul.f32 %v42, %v78
    %v85 = vmul.f32 %v43, %v79
    %v86 = vmul.f32 %v44, %v80
    %v87 = vmul.f32 %v45, %v81
    %v88 = vmul.f32 %v46, %v46
    %v89 = vmul.f32 %v47, %v47
    %v90 = vmul.f32 %v48, %v48
    %v91 = vmul.f32 %v49, %v49
    %v92 = vmul.f32 %v50, %v50
    %v93 = vmul.f32 %v51, %v51
    %94 = vadd.xlane.f32.xlu0 %v88
    %v95 = vpop.xlane.xlu0 %94
    %96 = vadd.xlane.f32.xlu0 %v89
    %v97 = vpop.xlane.xlu0 %96
    %98 = vadd.xlane.f32.xlu0 %v90
    %v99 = vpop.xlane.xlu0 %98
    %100 = vadd.xlane.f32.xlu0 %v91
    %v101 = vpop.xlane.xlu0 %100
    %102 = vadd.xlane.f32.xlu0 %v92
    %v103 = vpop.xlane.xlu0 %102
    %104 = vadd.xlane.f32.xlu0 %v93
    %v105 = vpop.xlane.xlu0 %104
    %v106 = vmax.f32 %v95, 1e-24
    %v107 = vmax.f32 %v97, 1e-24
    %v108 = vmax.f32 %v99, 1e-24
    %v109 = vmax.f32 %v101, 1e-24
    %v110 = vmax.f32 %v103, 1e-24
    %v111 = vmax.f32 %v105, 1e-24
    %v112 = vrsqrt.pop %v106
    %v113 = vrsqrt.pop %v107
    %v114 = vrsqrt.pop %v108
    %v115 = vrsqrt.pop %v109
    %v116 = vrsqrt.pop %v110
    %v117 = vrsqrt.pop %v111
    %v118 = vmul.f32 %v46, %v112
    %v119 = vmul.f32 %v47, %v113
    %v120 = vmul.f32 %v48, %v114
    %v121 = vmul.f32 %v49, %v115
    %v122 = vmul.f32 %v50, %v116
    %v123 = vmul.f32 %v51, %v117
    %v124 = vsub.f32 %v118, %v82
    %v125 = vsub.f32 %v119, %v83
    %v126 = vsub.f32 %v120, %v84
    %v127 = vsub.f32 %v121, %v85
    %v128 = vsub.f32 %v122, %v86
    %v129 = vsub.f32 %v123, %v87
    %v130 = vadd.f32 %v124, %v125
    %v131 = vmul.f32 %v130, %v130
    %v132 = vrot.slane %v131, 4
    %v133 = vadd.f32 %v131, %v132
    %v134 = vrot.slane %v133, 2
    %v135 = vadd.f32 %v133, %v134
    %v136 = vrot.slane %v135, 1
    %v137 = vadd.f32 %v135, %v136
    %v138 = vmul.f32 %v137, 0.000390625
    %v139 = vadd.f32 %v138, 0.0
    %v141 = vrot.slane %v126, 4
    %v143 = vadd.f32 %v126, %v141
    %v144 = vmul.f32 %v143, %v143
    %vm145 = vcmask 1043456
    %v146 = vsel %vm145, %v144, 0.0
    %v147 = vrot.slane %v146, 4
    %v148 = vadd.f32 %v146, %v147
    %v149 = vrot.slane %v148, 2
    %v150 = vadd.f32 %v148, %v149
    %v151 = vrot.slane %v150, 1
    %v152 = vadd.f32 %v150, %v151
    %v153 = vmul.f32 %v152, 0.00078125
    %v154 = vadd.f32 %v139, %v153
    %v156 = vrot.slane %v127, 1
    %v158 = vadd.f32 %v127, %v156
    %v159 = vmul.f32 %v158, %v158
    %v160 = vadd.f32 %v159, 0.0
    %v161 = vmul.f32 %v160, 0.0015625
    %v162 = vadd.f32 %v154, %v161
    %v163 = vadd.f32 %v128, %v129
    %v164 = vmul.f32 %v163, %v163
    %v165 = vrot.slane %v164, 4
    %v166 = vadd.f32 %v164, %v165
    %v167 = vrot.slane %v166, 2
    %v168 = vadd.f32 %v166, %v167
    %v169 = vrot.slane %v168, 1
    %v170 = vadd.f32 %v168, %v169
    %v171 = vmul.f32 %v170, 0.0001953125
    %v172 = vadd.f32 %v162, %v171
    %vm173 = vcmask 1040384
    %v174 = vsel %vm173, %v172, 0.0
    %175 = vadd.xlane.f32.xlu0 %v174
    %v176 = vpop.xlane.xlu0 %175
    %v177 = vrot.slane %v176, 4
    %v178 = vadd.f32 %v176, %v177
    %v179 = vrot.slane %v178, 2
    %v180 = vadd.f32 %v178, %v179
    %v181 = vrot.slane %v180, 1
    %v182 = vadd.f32 %v180, %v181
    %s183 = vtos %v182
    %s184 = smul.f32 %s183, 0.25
    %s185 = scalar_lea.smem [#allocation7], 0
    %186 = sst [smem:[%s185]] %s184
    // Predicated region
    $region18: #{tpu_custom_call.1} parent=1 // pred_check
      _
    $region19: #{tpu_custom_call.1} parent=1 // pred_check_branch
      %188 = sbr.rel (0) target = $region21
    $region20: #{tpu_custom_call.1} parent=1 // pred_region
      %s190 = ssub.s32 16, 16
      %191 = vsyncadd [#allocation4], %s190
      %194 = dma.smem_to_hbm [#allocation7], 16, %s2, [#allocation4]
    $region21: #{tpu_custom_call.1} parent=1 // pred_fallthru
      _
    // Predicated region
    $region22: #{tpu_custom_call.1} parent=1 // pred_check
      _
    $region23: #{tpu_custom_call.1} parent=1 // pred_check_branch
      %196 = sbr.rel (0) target = $region25
    $region24: #{tpu_custom_call.1} parent=1 // pred_region
      %197 = dma.done [#allocation4], 16
    $region25: #{tpu_custom_call.1} parent=1 // pred_fallthru
      _
    %198 = sfence
    %199 = vsyncpa [#allocation3], 1
    %200 = vsyncpa [#allocation6], 1
    %201 = vsyncpa [#allocation4], 1

</llo_original>
